<compile_context>
chip_gen: v5e
topology: v5e:2x2
jax: 0.10.0
libtpu: 0.0.40
codegen_flags: <defaults>
</compile_context>

<pallas_src>
import jax
import jax.numpy as jnp
from jax.experimental import pallas as pl
from jax.experimental.pallas import tpu as pltpu


def _round_up(x: int, m: int) -> int:
    return ((x + m - 1) // m) * m


def _vmem_cap_bytes() -> int:
    """~80% of physical VMEM (headroom for Mosaic internal scratch/semaphores)."""
    try:
        phys = int(pltpu.get_tpu_info().vmem_capacity_bytes)
    except Exception:
        phys = 64 << 20  # conservative fallback, legal on every generation
    return int(phys * 0.8)


# ----------------------------------------------------------------------------- #
# Kernels
# ----------------------------------------------------------------------------- #
def mlp_kernel(x_ref, w1_ref, b1_ref, w2_ref, b2_ref, o_ref, h_ref):
    """Weight-stationary path: full W1/W2 resident, batch-tiled activations."""
    # Layer 1 on the MXU with f32 accumulation; bias + ReLU on the f32 values.
    h = jnp.dot(x_ref[...], w1_ref[...], preferred_element_type=jnp.float32)
    h = jnp.maximum(h + b1_ref[...], 0.0)
    # Stage h in compute_dtype scratch (half the bytes of f32 in bf16 mode).
    h_ref[...] = h.astype(h_ref.dtype)
    # Layer 2, f32 accumulation, lane-dense output store.
    out = jnp.dot(h_ref[...], w2_ref[...], preferred_element_type=jnp.float32)
    o_ref[...] = (out + b2_ref[...]).astype(o_ref.dtype)


def mlp_kernel_htiled(x_ref, w1_ref, b1_ref, w2_ref, b2_ref, o_ref, acc_ref):
    """H-tiled fallback: W1 columns / W2 rows streamed over grid axis 1, output
    accumulated in an f32 VMEM scratch (init at j==0, finalize at last j)."""
    j = pl.program_id(1)

    @pl.when(j == 0)
    def _():
        acc_ref[...] = jnp.zeros_like(acc_ref)

    h = jnp.dot(x_ref[...], w1_ref[...], preferred_element_type=jnp.float32)
    h = jnp.maximum(h + b1_ref[...], 0.0)
    acc_ref[...] += jnp.dot(h.astype(w2_ref.dtype), w2_ref[...],
                            preferred_element_type=jnp.float32)

    @pl.when(j == pl.num_programs(1) - 1)
    def _():
        o_ref[...] = (acc_ref[...] + b2_ref[...]).astype(o_ref.dtype)


# ----------------------------------------------------------------------------- #
# Parameter preparation (hoisted out of the per-call forward)
# ----------------------------------------------------------------------------- #
def prepare_mlp_params(w1, b1, w2, b2, *, compute_dtype=None):
    """Pad/cast parameters once.  w1: [in, hidden]; w2: [hidden, out];
    b1/b2: [hidden]/[out] (or [1, .]).  Zero padding is exact under
    matmul / bias-add / ReLU.  compute_dtype feeds the MXU (bf16 recommended on
    v5e/v6e/v7x); accumulation, bias and ReLU always stay f32."""
    compute_dtype = (jnp.dtype(compute_dtype) if compute_dtype is not None
                     else jnp.dtype(w1.dtype))
    K, H = w1.shape
    N = w2.shape[1]
    K_p, H_p, N_p = (_round_up(d, 128) for d in (K, H, N))
    b1 = jnp.asarray(b1).reshape(1, -1)
    b2 = jnp.asarray(b2).reshape(1, -1)
    w1p = jnp.zeros((K_p, H_p), compute_dtype).at[:K, :H].set(w1.astype(compute_dtype))
    w2p = jnp.zeros((H_p, N_p), compute_dtype).at[:H, :N].set(w2.astype(compute_dtype))
    b1p = jnp.zeros((1, H_p), jnp.float32).at[:, :H].set(b1.astype(jnp.float32))
    b2p = jnp.zeros((1, N_p), jnp.float32).at[:, :N].set(b2.astype(jnp.float32))
    return dict(w1=w1p, b1=b1p, w2=w2p, b2=b2p,
                dims=(K, H, N), compute_dtype=compute_dtype)


# ----------------------------------------------------------------------------- #
# Forward wrapper
# ----------------------------------------------------------------------------- #
def mlp_forward(x, params, *, tile_b=256, force_tiled=False):
    """Fused MLP forward: relu(x @ w1 + b1) @ w2 + b2, using prepared params."""
    out_dtype = x.dtype
    compute_dtype = params["compute_dtype"]
    K, H, N = params["dims"]
    w1p, b1p, w2p, b2p = params["w1"], params["b1"], params["w2"], params["b2"]
    K_p, H_p = w1p.shape
    N_p = w2p.shape[1]

    B = x.shape[0]
    sub = 16 if compute_dtype == jnp.dtype(jnp.bfloat16) else 8

    # Batch tile: default 256; ensure >= 2 grid steps when possible so both v7x
    # TensorCores get work on the "parallel" batch axis.
    TB = min(tile_b, _round_up(B, sub))
    if _round_up(B, TB) // TB < 2 and B > sub:
        TB = min(TB, _round_up((B + 1) // 2, sub))
    B_p = _round_up(B, TB)
    grid_steps = B_p // TB

    itm = compute_dtype.itemsize
    out_itm = jnp.dtype(out_dtype).itemsize
    cap = _vmem_cap_bytes()

    # Resident footprint: weights/biases single-buffered, x/out double-buffered,
    # plus the compute_dtype h scratch.
    weight_bytes = (K_p * H_p + H_p * N_p) * itm + (H_p + N_p) * 4
    act_bytes = 2 * TB * K_p * itm + 2 * TB * N_p * out_itm + TB * H_p * itm
    resident_fits = (not force_tiled) and (weight_bytes <= 0.6 * cap) \
        and (weight_bytes + act_bytes <= cap)

    # Pad x only when actually needed.
    if (B_p != B) or (K_p != K) or (x.dtype != compute_dtype):
        xp = jnp.zeros((B_p, K_p), compute_dtype).at[:B, :K].set(
            x.astype(compute_dtype))
    else:
        xp = x

    if resident_fits:
        vmem_needed = weight_bytes + act_bytes
        vmem_limit = int(min(max(int(vmem_needed * 1.25), 16 << 20), cap))

        def _resident(shape):  # constant index_map -> single buffer
            return pl.BlockSpec(shape, lambda i: (0, 0),
                                pipeline_mode=pl.Buffered(1))

        out_p = pl.pallas_call(
            mlp_kernel,
            out_shape=jax.ShapeDtypeStruct((B_p, N_p), out_dtype),
            grid_spec=pltpu.PrefetchScalarGridSpec(
                num_scalar_prefetch=0,
                grid=(grid_steps,),
                in_specs=[
                    pl.BlockSpec((TB, K_p), lambda i: (i, 0)),  # x: batch-tiled
                    _resident((K_p, H_p)),                       # w1
                    _resident((1, H_p)),                         # b1
                    _resident((H_p, N_p)),                       # w2
                    _resident((1, N_p)),                         # b2
                ],
                out_specs=pl.BlockSpec((TB, N_p), lambda i: (i, 0)),
                scratch_shapes=[pltpu.VMEM((TB, H_p), compute_dtype)],
            ),
            compiler_params=pltpu.CompilerParams(
                dimension_semantics=("parallel",),
                vmem_limit_bytes=vmem_limit,
            ),
        )(xp, w1p, b1p, w2p, b2p)
    else:
        # H-tiled fallback: largest TH (multiple of 128, divides H_p) whose
        # double-buffered W1/W2 slices fit in ~60% of the budget.
        TH = 128
        for cand in range(min(H_p, 2048), 0, -128):
            if H_p % cand:
                continue
            if 2 * (K_p * cand + cand * N_p) * itm <= 0.6 * cap:
                TH = cand
                break
        h_steps = H_p // TH
        vmem_needed = (2 * (K_p * TH + TH * N_p) * itm + (TH + N_p) * 4
                       + 2 * TB * K_p * itm + 2 * TB * N_p * out_itm
                       + TB * N_p * 4)
        vmem_limit = int(min(max(int(vmem_needed * 1.25), 16 << 20), cap))

        out_p = pl.pallas_call(
            mlp_kernel_htiled,
            out_shape=jax.ShapeDtypeStruct((B_p, N_p), out_dtype),
            grid_spec=pltpu.PrefetchScalarGridSpec(
                num_scalar_prefetch=0,
                grid=(grid_steps, h_steps),
                in_specs=[
                    pl.BlockSpec((TB, K_p), lambda i, j: (i, 0)),   # x
                    pl.BlockSpec((K_p, TH), lambda i, j: (0, j)),   # w1 cols
                    pl.BlockSpec((1, TH), lambda i, j: (0, j)),     # b1 slice
                    pl.BlockSpec((TH, N_p), lambda i, j: (j, 0)),   # w2 rows
                    pl.BlockSpec((1, N_p), lambda i, j: (0, 0),     # b2 resident
                                 pipeline_mode=pl.Buffered(1)),
                ],
                out_specs=pl.BlockSpec((TB, N_p), lambda i, j: (i, 0)),
                scratch_shapes=[pltpu.VMEM((TB, N_p), jnp.float32)],
            ),
            compiler_params=pltpu.CompilerParams(
                dimension_semantics=("parallel", "arbitrary"),
                vmem_limit_bytes=vmem_limit,
            ),
        )(xp, w1p, b1p, w2p, b2p)

    if (B_p, N_p) == (B, N):
        return out_p
    return out_p[:B, :N]


def mlp_forward_raw(x, w1, b1, w2, b2, *, compute_dtype=None, tile_b=256,
                    force_tiled=False):
    """One-off convenience wrapper (prefer prepare_mlp_params + mlp_forward)."""
    params = prepare_mlp_params(w1, b1, w2, b2, compute_dtype=compute_dtype)
    return mlp_forward(x, params, tile_b=tile_b, force_tiled=force_tiled)


def init_linear_params(key, in_features, out_features, dtype=jnp.float32):
    """torch.nn.Linear-style init: U(-1/sqrt(fan_in), +1/sqrt(fan_in)).
       Weight is returned pre-transposed to [in_features, out_features]."""
    kw, kb = jax.random.split(key)
    bound = 1.0 / jnp.sqrt(jnp.asarray(in_features, dtype))
    w = jax.random.uniform(kw, (in_features, out_features), dtype, -bound, bound)
    b = jax.random.uniform(kb, (1, out_features), dtype, -bound, bound)
    return w, b


if __name__ == "__main__":
    # Small shapes consistent with MLP(input_dim, output_dim, hidden_dim).
    batch, input_dim, hidden_dim, output_dim = 8, 16, 32, 4

    key = jax.random.PRNGKey(0)
    kx, k1, k2 = jax.random.split(key, 3)

    x = jax.random.normal(kx, (batch, input_dim), jnp.float32)
    w1, b1 = init_linear_params(k1, input_dim, hidden_dim)
    w2, b2 = init_linear_params(k2, hidden_dim, output_dim)

    ref = jnp.maximum(x @ w1 + b1, 0.0) @ w2 + b2

    # f32 resident (weight-stationary) path — exact vs reference.
    params_f32 = prepare_mlp_params(w1, b1, w2, b2)
    out = jax.block_until_ready(mlp_forward(x, params_f32))
    assert out.shape == (batch, output_dim)
    assert jnp.allclose(out, ref, atol=1e-5, rtol=1e-5)

    # bf16 MXU inputs, f32 accumulation/bias/ReLU (recommended on v5e/v6e/v7x).
    params_bf16 = prepare_mlp_params(w1, b1, w2, b2, compute_dtype=jnp.bfloat16)
    out_bf16 = jax.block_until_ready(mlp_forward(x, params_bf16))
    assert out_bf16.shape == (batch, output_dim)
    assert jnp.allclose(out_bf16, ref, atol=1e-1, rtol=5e-2)

    # H-tiled accumulator fallback (used when weights don't fit resident in VMEM
    # at production widths, esp. on v7x); forced here to validate it compiles/runs.
    out_tiled = jax.block_until_ready(mlp_forward(x, params_f32, force_tiled=True))
    assert out_tiled.shape == (batch, output_dim)
    assert jnp.allclose(out_tiled, ref, atol=1e-5, rtol=1e-5)

    print("KERNEL_OK")
</pallas_src>

<mosaic_0001>
module attributes {stable_mosaic.version = 11 : i64} {
  func.func @mlp_kernel(%arg0: i32, %arg1: memref<8x128xf32, #tpu.memory_space<vmem>>, %arg2: memref<128x128xf32, #tpu.memory_space<vmem>>, %arg3: memref<1x128xf32, #tpu.memory_space<vmem>>, %arg4: memref<128x128xf32, #tpu.memory_space<vmem>>, %arg5: memref<1x128xf32, #tpu.memory_space<vmem>>, %arg6: memref<8x128xf32, #tpu.memory_space<vmem>>, %arg7: memref<8x128xf32, #tpu.memory_space<vmem>>) attributes {dimension_semantics = [#tpu.dimension_semantics<parallel>], iteration_bounds = array<i64: 1>, scalar_prefetch = 0 : i64, scratch_operands = 1 : i64, tpu.core_type = #tpu.core_type<tc>, window_params = [{transform_indices = @transform_0, window_bounds = array<i64: 8, 128>}, {pipeline_mode = #tpu.pipeline_mode<synchronous>, transform_indices = @transform_1, window_bounds = array<i64: 128, 128>}, {pipeline_mode = #tpu.pipeline_mode<synchronous>, transform_indices = @transform_2, window_bounds = array<i64: 1, 128>}, {pipeline_mode = #tpu.pipeline_mode<synchronous>, transform_indices = @transform_3, window_bounds = array<i64: 128, 128>}, {pipeline_mode = #tpu.pipeline_mode<synchronous>, transform_indices = @transform_4, window_bounds = array<i64: 1, 128>}, {transform_indices = @transform_5, window_bounds = array<i64: 8, 128>}]} {
    %c0 = arith.constant 0 : index
    %c0_0 = arith.constant 0 : index
    %0 = vector.load %arg1[%c0, %c0_0] : memref<8x128xf32, #tpu.memory_space<vmem>>, vector<8x128xf32>
    %c0_1 = arith.constant 0 : index
    %c0_2 = arith.constant 0 : index
    %1 = vector.load %arg2[%c0_1, %c0_2] : memref<128x128xf32, #tpu.memory_space<vmem>>, vector<128x128xf32>
    %cst = arith.constant dense<0.000000e+00> : vector<8x128xf32>
    %2 = tpu.matmul %0, %1, %cst {dimension_numbers = #tpu.dot_dimension_numbers<[1], [0], [0], [1], [0, 0, 1, 1], [], []>} : vector<8x128xf32>, vector<128x128xf32>, vector<8x128xf32> -> vector<8x128xf32>
    %c0_3 = arith.constant 0 : index
    %c0_4 = arith.constant 0 : index
    %3 = vector.load %arg3[%c0_3, %c0_4] : memref<1x128xf32, #tpu.memory_space<vmem>>, vector<1x128xf32>
    %4 = vector.broadcast %3 : vector<1x128xf32> to vector<8x128xf32>
    %5 = arith.addf %2, %4 : vector<8x128xf32>
    %cst_5 = arith.constant 0.000000e+00 : f32
    %6 = vector.broadcast %cst_5 : f32 to vector<8x128xf32>
    %7 = arith.maximumf %5, %6 : vector<8x128xf32>
    %c0_6 = arith.constant 0 : index
    %c0_7 = arith.constant 0 : index
    %8 = vector.load %arg7[%c0_6, %c0_7] : memref<8x128xf32, #tpu.memory_space<vmem>>, vector<8x128xf32>
    tpu.vector_store %arg7[%c0_6, %c0_7], %7 {strides = array<i32>} : memref<8x128xf32, #tpu.memory_space<vmem>>, vector<8x128xf32>,
    %c0_8 = arith.constant 0 : index
    %c0_9 = arith.constant 0 : index
    %9 = vector.load %arg7[%c0_8, %c0_9] : memref<8x128xf32, #tpu.memory_space<vmem>>, vector<8x128xf32>
    %c0_10 = arith.constant 0 : index
    %c0_11 = arith.constant 0 : index
    %10 = vector.load %arg4[%c0_10, %c0_11] : memref<128x128xf32, #tpu.memory_space<vmem>>, vector<128x128xf32>
    %cst_12 = arith.constant dense<0.000000e+00> : vector<8x128xf32>
    %11 = tpu.matmul %9, %10, %cst_12 {dimension_numbers = #tpu.dot_dimension_numbers<[1], [0], [0], [1], [0, 0, 1, 1], [], []>} : vector<8x128xf32>, vector<128x128xf32>, vector<8x128xf32> -> vector<8x128xf32>
    %c0_13 = arith.constant 0 : index
    %c0_14 = arith.constant 0 : index
    %12 = vector.load %arg5[%c0_13, %c0_14] : memref<1x128xf32, #tpu.memory_space<vmem>>, vector<1x128xf32>
    %13 = vector.broadcast %12 : vector<1x128xf32> to vector<8x128xf32>
    %14 = arith.addf %11, %13 : vector<8x128xf32>
    %c0_15 = arith.constant 0 : index
    %c0_16 = arith.constant 0 : index
    %15 = vector.load %arg6[%c0_15, %c0_16] : memref<8x128xf32, #tpu.memory_space<vmem>>, vector<8x128xf32>
    tpu.vector_store %arg6[%c0_15, %c0_16], %14 {strides = array<i32>} : memref<8x128xf32, #tpu.memory_space<vmem>>, vector<8x128xf32>,
    return
  }
  func.func @transform_0(%arg0: i32) -> (i32, i32) {
    %c0_i32 = arith.constant 0 : i32
    %c0_i32_0 = arith.constant 0 : i32
    return %arg0, %c0_i32 : i32, i32
  }
  func.func @transform_1(%arg0: i32) -> (i32, i32) {
    %c0_i32 = arith.constant 0 : i32
    %c0_i32_0 = arith.constant 0 : i32
    %c0_i32_1 = arith.constant 0 : i32
    return %c0_i32, %c0_i32_0 : i32, i32
  }
  func.func @transform_2(%arg0: i32) -> (i32, i32) {
    %c0_i32 = arith.constant 0 : i32
    %c0_i32_0 = arith.constant 0 : i32
    %c0_i32_1 = arith.constant 0 : i32
    return %c0_i32, %c0_i32_0 : i32, i32
  }
  func.func @transform_3(%arg0: i32) -> (i32, i32) {
    %c0_i32 = arith.constant 0 : i32
    %c0_i32_0 = arith.constant 0 : i32
    %c0_i32_1 = arith.constant 0 : i32
    return %c0_i32, %c0_i32_0 : i32, i32
  }
  func.func @transform_4(%arg0: i32) -> (i32, i32) {
    %c0_i32 = arith.constant 0 : i32
    %c0_i32_0 = arith.constant 0 : i32
    %c0_i32_1 = arith.constant 0 : i32
    return %c0_i32, %c0_i32_0 : i32, i32
  }
  func.func @transform_5(%arg0: i32) -> (i32, i32) {
    %c0_i32 = arith.constant 0 : i32
    %c0_i32_0 = arith.constant 0 : i32
    return %arg0, %c0_i32 : i32, i32
  }
}

</mosaic_0001>

<llo_original>
// kernel: tpu_custom_call.1
$region0: #{tpu_custom_call.1}
  #allocation0 [shape = 'u32[]', space=smem, size = 0x4, offset = 0x4, fixed_abs, tag = 'smem constant byte address 0x4 - core index']
  #allocation1 [shape = 'u32[72,128]{1,0:T(1,128)}', space=vmem, size = 0x9000, scoped, tag = 'internal scratch']
  #allocation2 [shape = 'f32[8,128]{1,0:T(8,128)}', space=vmem, size = 0x1000, scoped, tag = 'scratch operand']
  %s0 = inlined_call_operand.hbm [shape: f32[8,128], index: 0, kind: input, shape index: {}]
  %s1 = inlined_call_operand.hbm [shape: f32[128,128], index: 1, kind: input, shape index: {}]
  %s2 = inlined_call_operand.vmem [shape: f32[1,128], index: 2, kind: input, shape index: {}]
  %s3 = inlined_call_operand.hbm [shape: f32[128,128], index: 3, kind: input, shape index: {}]
  %s4 = inlined_call_operand.vmem [shape: f32[1,128], index: 4, kind: input, shape index: {}]
  %s5 = inlined_call_operand.hbm [shape: f32[8,128], index: 5, kind: output, shape index: {}]
  %s6 = sld [smem:[#allocation0]]
  $region42: #{tpu_custom_call.1} parent=0
    _
  %s8 = ssub.s32 1, %s6
  %s9 = scalar_select 0, %s8, %s6
  $region1: #{tpu_custom_call.1} parent=0
    #allocation3 [shape = 'u8[4096]{0}', space=vmem, size = 0x1000, scoped, tag = 'input window, operand 0, single buffered']
    #allocation4 [shape = 's32[1]{0}', space=sflag, size = 0x4, scoped, tag = 'scoped memory for tpu_custom_call.1']
    #allocation5 [shape = 's32[1]{0}', space=sflag, size = 0x4, scoped, tag = 'scoped memory for tpu_custom_call.1']
    #allocation6 [shape = 'u8[65536]{0}', space=vmem, size = 0x10000, scoped, tag = 'input window, operand 1, single buffered']
    #allocation7 [shape = 's32[1]{0}', space=sflag, size = 0x4, scoped, tag = 'scoped memory for tpu_custom_call.1']
    #allocation8 [shape = 'u8[65536]{0}', space=vmem, size = 0x10000, scoped, tag = 'input window, operand 3, single buffered']
    #allocation9 [shape = 'u8[4096]{0}', space=vmem, size = 0x1000, scoped, tag = 'output window, operand 0, single buffered']
    %10 = vsyncpa [#allocation4], 0
    %11 = vsyncpa [#allocation7], 0
    %12 = vsyncpa [#allocation5], 0
    // Predicated region
    $region2: #{tpu_custom_call.1} parent=1 // pred_check
      _
    $region3: #{tpu_custom_call.1} parent=1 // pred_check_branch
      %14 = sbr.rel (0) target = $region5
    $region4: #{tpu_custom_call.1} parent=1 // pred_region
      %16 = vsyncadd [#allocation4], 0
      %s18 = sshll.u32 %s0, 4
      %s19 = int_to_ptr.hbm [resolvable:$true] %s18
      %s20 = sshll.u32 [#allocation3], 4
      %s21 = int_to_ptr.vmem [resolvable:$true] %s20
      %23 = dma.hbm_to_vmem [thread:$0]  %s19, 128, %s21, [#allocation4]
    $region5: #{tpu_custom_call.1} parent=1 // pred_fallthru
      _
    // Predicated region
    $region6: #{tpu_custom_call.1} parent=1 // pred_check
      _
    $region7: #{tpu_custom_call.1} parent=1 // pred_check_branch
      %25 = sbr.rel (0) target = $region9
    $region8: #{tpu_custom_call.1} parent=1 // pred_region
      %27 = vsyncadd [#allocation7], 0
      %s28 = sshll.u32 %s1, 4
      %s29 = int_to_ptr.hbm [resolvable:$true] %s28
      %s30 = sshll.u32 [#allocation6], 4
      %s31 = int_to_ptr.vmem [resolvable:$true] %s30
      %36 = dma.hbm_to_vmem [thread:$0]  %s29, 2048, %s31, [#allocation7], 128, 128, 8
    $region9: #{tpu_custom_call.1} parent=1 // pred_fallthru
      _
    // Predicated region
    $region10: #{tpu_custom_call.1} parent=1 // pred_check
      _
    $region11: #{tpu_custom_call.1} parent=1 // pred_check_branch
      %38 = sbr.rel (0) target = $region13
    $region12: #{tpu_custom_call.1} parent=1 // pred_region
      _
    $region13: #{tpu_custom_call.1} parent=1 // pred_fallthru
      _
    // Predicated region
    $region14: #{tpu_custom_call.1} parent=1 // pred_check
      _
    $region15: #{tpu_custom_call.1} parent=1 // pred_check_branch
      %40 = sbr.rel (0) target = $region17
    $region16: #{tpu_custom_call.1} parent=1 // pred_region
      %42 = vsyncadd [#allocation7], 0
      %s43 = sshll.u32 %s3, 4
      %s44 = int_to_ptr.hbm [resolvable:$true] %s43
      %s45 = sshll.u32 [#allocation8], 4
      %s46 = int_to_ptr.vmem [resolvable:$true] %s45
      %51 = dma.hbm_to_vmem [thread:$0]  %s44, 2048, %s46, [#allocation7], 128, 128, 8
    $region17: #{tpu_custom_call.1} parent=1 // pred_fallthru
      _
    // Predicated region
    $region18: #{tpu_custom_call.1} parent=1 // pred_check
      _
    $region19: #{tpu_custom_call.1} parent=1 // pred_check_branch
      %53 = sbr.rel (0) target = $region21
    $region20: #{tpu_custom_call.1} parent=1 // pred_region
      _
    $region21: #{tpu_custom_call.1} parent=1 // pred_fallthru
      _
    // Predicated region
    $region22: #{tpu_custom_call.1} parent=1 // pred_check
      _
    $region23: #{tpu_custom_call.1} parent=1 // pred_check_branch
      %55 = sbr.rel (0) target = $region25
    $region24: #{tpu_custom_call.1} parent=1 // pred_region
      %57 = dma.done [#allocation4], 128
    $region25: #{tpu_custom_call.1} parent=1 // pred_fallthru
      _
    // Predicated region
    $region26: #{tpu_custom_call.1} parent=1 // pred_check
      _
    $region27: #{tpu_custom_call.1} parent=1 // pred_check_branch
      %59 = sbr.rel (0) target = $region29
    $region28: #{tpu_custom_call.1} parent=1 // pred_region
      %61 = dma.done [#allocation7], 2048
    $region29: #{tpu_custom_call.1} parent=1 // pred_fallthru
      _
    // Predicated region
    $region30: #{tpu_custom_call.1} parent=1 // pred_check
      _
    $region31: #{tpu_custom_call.1} parent=1 // pred_check_branch
      %63 = sbr.rel (0) target = $region33
    $region32: #{tpu_custom_call.1} parent=1 // pred_region
      %65 = dma.done [#allocation7], 2048
    $region33: #{tpu_custom_call.1} parent=1 // pred_fallthru
      _
    %v66 = vld [vmem:[#allocation3] sm:$0xff]
    %v67 = vld [vmem:[#allocation6] sm:$0xff]
    %v68 = vld [vmem:[#allocation6 + $0x8] sm:$0xff]
    %v69 = vld [vmem:[#allocation6 + $0x10] sm:$0xff]
    %v70 = vld [vmem:[#allocation6 + $0x18] sm:$0xff]
    %v71 = vld [vmem:[#allocation6 + $0x20] sm:$0xff]
    %v72 = vld [vmem:[#allocation6 + $0x28] sm:$0xff]
    %v73 = vld [vmem:[#allocation6 + $0x30] sm:$0xff]
    %v74 = vld [vmem:[#allocation6 + $0x38] sm:$0xff]
    %v75 = vld [vmem:[#allocation6 + $0x40] sm:$0xff]
    %v76 = vld [vmem:[#allocation6 + $0x48] sm:$0xff]
    %v77 = vld [vmem:[#allocation6 + $0x50] sm:$0xff]
    %v78 = vld [vmem:[#allocation6 + $0x58] sm:$0xff]
    %v79 = vld [vmem:[#allocation6 + $0x60] sm:$0xff]
    %v80 = vld [vmem:[#allocation6 + $0x68] sm:$0xff]
    %v81 = vld [vmem:[#allocation6 + $0x70] sm:$0xff]
    %v82 = vld [vmem:[#allocation6 + $0x78] sm:$0xff]
    %v83 = vld [vmem:[%s2] sm:$0x1]
    %v85 = vperm.slane %v83, 0
    %87 = vmatpush.msra.mxu0 %v82
    %88 = vmatpush.msra.mxu0 %v81
    %89 = vmatpush.msra.mxu0 %v80
    %90 = vmatpush.msra.mxu0 %v79
    %91 = vmatpush.msra.mxu0 %v78
    %92 = vmatpush.msra.mxu0 %v77
    %93 = vmatpush.msra.mxu0 %v76
    %94 = vmatpush.msra.mxu0 %v75
    %95 = vmatpush.msra.mxu0 %v74
    %96 = vmatpush.msra.mxu0 %v73
    %97 = vmatpush.msra.mxu0 %v72
    %98 = vmatpush.msra.mxu0 %v71
    %99 = vmatpush.msra.mxu0 %v70
    %100 = vmatpush.msra.mxu0 %v69
    %101 = vmatpush.msra.mxu0 %v68
    %102 = vmatpush.msra.mxu0 %v67
    %103 = vmatmul.f32.gmra.mxu0 %v66
    %v104 = vpop.f32.mrf.mxu0
    %v105 = vadd.f32 %v85, %v104
    %106 = vdwg.mxu0
    %v107 = vmax.f32 %v105, 0.0
    %108 = vst [vmem:[#allocation2] sm:$0xff] %v107
    %v109 = vld [vmem:[#allocation2] sm:$0xff]
    %v110 = vld [vmem:[#allocation8] sm:$0xff]
    %v111 = vld [vmem:[#allocation8 + $0x8] sm:$0xff]
    %v112 = vld [vmem:[#allocation8 + $0x10] sm:$0xff]
    %v113 = vld [vmem:[#allocation8 + $0x18] sm:$0xff]
    %v114 = vld [vmem:[#allocation8 + $0x20] sm:$0xff]
    %v115 = vld [vmem:[#allocation8 + $0x28] sm:$0xff]
    %v116 = vld [vmem:[#allocation8 + $0x30] sm:$0xff]
    %v117 = vld [vmem:[#allocation8 + $0x38] sm:$0xff]
    %v118 = vld [vmem:[#allocation8 + $0x40] sm:$0xff]
    %v119 = vld [vmem:[#allocation8 + $0x48] sm:$0xff]
    %v120 = vld [vmem:[#allocation8 + $0x50] sm:$0xff]
    %v121 = vld [vmem:[#allocation8 + $0x58] sm:$0xff]
    %v122 = vld [vmem:[#allocation8 + $0x60] sm:$0xff]
    %v123 = vld [vmem:[#allocation8 + $0x68] sm:$0xff]
    %v124 = vld [vmem:[#allocation8 + $0x70] sm:$0xff]
    %v125 = vld [vmem:[#allocation8 + $0x78] sm:$0xff]
    %v126 = vld [vmem:[%s4] sm:$0x1]
    %v128 = vperm.slane %v126, 0
    %130 = vmatpush.msra.mxu0 %v125
    %131 = vmatpush.msra.mxu0 %v124
    %132 = vmatpush.msra.mxu0 %v123
    %133 = vmatpush.msra.mxu0 %v122
    %134 = vmatpush.msra.mxu0 %v121
    %135 = vmatpush.msra.mxu0 %v120
    %136 = vmatpush.msra.mxu0 %v119
    %137 = vmatpush.msra.mxu0 %v118
    %138 = vmatpush.msra.mxu0 %v117
    %139 = vmatpush.msra.mxu0 %v116
    %140 = vmatpush.msra.mxu0 %v115
    %141 = vmatpush.msra.mxu0 %v114
    %142 = vmatpush.msra.mxu0 %v113
    %143 = vmatpush.msra.mxu0 %v112
    %144 = vmatpush.msra.mxu0 %v111
    %145 = vmatpush.msra.mxu0 %v110
    %146 = vmatmul.f32.gmra.mxu0 %v109
    %v147 = vpop.f32.mrf.mxu0
    %v148 = vadd.f32 %v128, %v147
    %149 = vdwg.mxu0
    %150 = vst [vmem:[#allocation9] sm:$0xff] %v148
    // Predicated region
    $region34: #{tpu_custom_call.1} parent=1 // pred_check
      _
    $region35: #{tpu_custom_call.1} parent=1 // pred_check_branch
      %152 = sbr.rel (0) target = $region37
    $region36: #{tpu_custom_call.1} parent=1 // pred_region
      %154 = vsyncadd [#allocation5], 0
      %s156 = sshll.u32 [#allocation9], 4
      %s157 = int_to_ptr.vmem [resolvable:$true] %s156
      %s158 = sshll.u32 %s5, 4
      %s159 = int_to_ptr.hbm [resolvable:$true] %s158
      %161 = dma.vmem_to_hbm [thread:$0]  %s157, 128, %s159, [#allocation5]
    $region37: #{tpu_custom_call.1} parent=1 // pred_fallthru
      _
    // Predicated region
    $region38: #{tpu_custom_call.1} parent=1 // pred_check
      _
    $region39: #{tpu_custom_call.1} parent=1 // pred_check_branch
      %163 = sbr.rel (0) target = $region41
    $region40: #{tpu_custom_call.1} parent=1 // pred_region
      %165 = dma.done [#allocation5], 128
    $region41: #{tpu_custom_call.1} parent=1 // pred_fallthru
      _
    %166 = vsyncpa [#allocation4], 1
    %167 = vsyncpa [#allocation7], 1
    %168 = vsyncpa [#allocation5], 1

</llo_original>
